<compile_context>
chip_gen: v6e
topology: v6e:2x2x1
jax: 0.10.0
libtpu: 0.0.40
codegen_flags: <defaults>
</compile_context>

<pallas_src>
import functools
import math

import jax
import jax.numpy as jnp
from jax.experimental import pallas as pl
from jax.experimental.pallas import tpu as pltpu


def _select_dma_kernel(x_ref, o_ref, sems, *, idx, chunks):
    # x_ref: (pre, D, post) raw HBM ref; o_ref: (pre, post) raw HBM ref.
    # `idx` and `chunks` are static Python values -> static strided DMAs.
    copies = []
    for c, (start, size) in enumerate(chunks):
        cp = pltpu.make_async_copy(
            x_ref.at[pl.ds(start, size), idx, :],   # strided read: only the selected slab
            o_ref.at[pl.ds(start, size), :],
            sems.at[c],
        )
        cp.start()
        copies.append(cp)
    # Wait only after all starts so the chunk DMAs overlap each other.
    for cp in copies:
        cp.wait()


def pallas_select(x, dim, idx):
    """JAX/Pallas equivalent of torch.Tensor.select(dim, idx)."""
    shape = x.shape
    ndim = x.ndim
    if dim < 0:
        dim += ndim
    if idx < 0:
        idx += shape[dim]
    assert 0 <= dim < ndim and 0 <= idx < shape[dim]

    pre = math.prod(shape[:dim]) if dim > 0 else 1
    D = shape[dim]
    post = math.prod(shape[dim + 1:]) if dim < ndim - 1 else 1
    out_shape = shape[:dim] + shape[dim + 1:]

    # Pure metadata reshape (row-major contiguous) into the canonical 3-D view.
    x3 = x.reshape(pre, D, post)

    # Split the copy into a few row-chunks so several DMAs are outstanding.
    # Chunks are sized by bytes (>= ~1 MiB each) so tiny inputs get a single
    # DMA and large inputs get up to 8 concurrent transfers.
    itemsize = jnp.dtype(x.dtype).itemsize
    total_bytes = pre * post * itemsize
    n_chunks = int(max(1, min(8, pre, total_bytes // (1 << 20))))
    bounds = [(i * pre) // n_chunks for i in range(n_chunks + 1)]
    chunks = tuple(
        (bounds[i], bounds[i + 1] - bounds[i]) for i in range(n_chunks)
    )

    out2d = pl.pallas_call(
        functools.partial(_select_dma_kernel, idx=idx, chunks=chunks),
        out_shape=jax.ShapeDtypeStruct((pre, post), x.dtype),
        in_specs=[pl.BlockSpec(memory_space=pl.ANY)],    # raw HBM ref, no auto-DMA
        out_specs=pl.BlockSpec(memory_space=pl.ANY),     # written only via DMA
        scratch_shapes=[pltpu.SemaphoreType.DMA((n_chunks,))],
        compiler_params=pltpu.CompilerParams(has_side_effects=True),
    )(x3)

    return out2d.reshape(out_shape)


class Select:
    """Mirror of the PyTorch `Select` module (forward only)."""

    def __init__(self, dim, idx):
        self.param_dict = {"dim": dim, "index": idx}

    def __call__(self, tensor):
        return pallas_select(tensor, self.param_dict["dim"], self.param_dict["index"])


if __name__ == "__main__":
    key = jax.random.PRNGKey(0)
    # Small NCHW-like activation: batch=2, channels=4, spatial=16x16.
    x = jax.random.normal(key, (2, 4, 16, 16), dtype=jnp.float32)

    # Select(dim=1, idx=2): pick channel 2 -> (2, 16, 16)
    out = Select(1, 2)(x)
    jax.block_until_ready(out)
    assert out.shape == (2, 16, 16)
    assert bool(jnp.array_equal(out, x[:, 2]))

    # Select(dim=-1, idx=5): pick last-dim element 5 -> (2, 4, 16)
    out2 = Select(-1, 5)(x)
    jax.block_until_ready(out2)
    assert out2.shape == (2, 4, 16)
    assert bool(jnp.array_equal(out2, x[..., 5]))

    # Select(dim=0, idx=1): pick batch element 1 -> (4, 16, 16)
    out3 = pallas_select(x, 0, 1)
    jax.block_until_ready(out3)
    assert out3.shape == (4, 16, 16)
    assert bool(jnp.array_equal(out3, x[1]))

    print("KERNEL_OK")
</pallas_src>

<mosaic_0001>
module attributes {stable_mosaic.version = 11 : i64} {
  func.func @_select_dma_kernel(%arg0: memref<2x4x256xf32, #tpu.memory_space<any>>, %arg1: memref<2x256xf32, #tpu.memory_space<any>>, %arg2: memref<1x!tpu.dma_semaphore, #tpu.memory_space<semaphore_mem>>) attributes {dimension_semantics = [], scalar_prefetch = 0 : i64, scratch_operands = 1 : i64, tpu.core_type = #tpu.core_type<tc>} {
    %c2_i32 = arith.constant 2 : i32
    %c0_i32 = arith.constant 0 : i32
    %c0_i32_0 = arith.constant 0 : i32
    %c0_i32_1 = arith.constant 0 : i32
    %0 = tpu.memref_slice %arg0[%c0_i32_0, %c2_i32, %c0_i32_1] : memref<2x4x256xf32, #tpu.memory_space<any>> -> memref<2x1x256xf32, #tpu.memory_space<any>>
    %1 = tpu.memref_squeeze %0 : memref<2x1x256xf32, #tpu.memory_space<any>> -> memref<2x256xf32, #tpu.memory_space<any>>
    %c0_i32_2 = arith.constant 0 : i32
    %c0_i32_3 = arith.constant 0 : i32
    %2 = tpu.memref_slice %arg1[%c0_i32_2, %c0_i32_3] : memref<2x256xf32, #tpu.memory_space<any>> -> memref<2x256xf32, #tpu.memory_space<any>>
    %3 = tpu.memref_slice %arg2[%c0_i32] : memref<1x!tpu.dma_semaphore, #tpu.memory_space<semaphore_mem>> -> memref<1x!tpu.dma_semaphore, #tpu.memory_space<semaphore_mem>>
    %4 = tpu.memref_squeeze %3 : memref<1x!tpu.dma_semaphore, #tpu.memory_space<semaphore_mem>> -> memref<!tpu.dma_semaphore, #tpu.memory_space<semaphore_mem>>
    tpu.enqueue_dma source(%1 : memref<2x256xf32, #tpu.memory_space<any>>) target(%2 : memref<2x256xf32, #tpu.memory_space<any>>) target_semaphore(%4 : memref<!tpu.dma_semaphore, #tpu.memory_space<semaphore_mem>>)
    %c2_i32_4 = arith.constant 2 : i32
    %c0_i32_5 = arith.constant 0 : i32
    %c0_i32_6 = arith.constant 0 : i32
    %c0_i32_7 = arith.constant 0 : i32
    %5 = tpu.memref_slice %arg0[%c0_i32_6, %c2_i32_4, %c0_i32_7] : memref<2x4x256xf32, #tpu.memory_space<any>> -> memref<2x1x256xf32, #tpu.memory_space<any>>
    %6 = tpu.memref_squeeze %5 : memref<2x1x256xf32, #tpu.memory_space<any>> -> memref<2x256xf32, #tpu.memory_space<any>>
    %c0_i32_8 = arith.constant 0 : i32
    %c0_i32_9 = arith.constant 0 : i32
    %7 = tpu.memref_slice %arg1[%c0_i32_8, %c0_i32_9] : memref<2x256xf32, #tpu.memory_space<any>> -> memref<2x256xf32, #tpu.memory_space<any>>
    %8 = tpu.memref_slice %arg2[%c0_i32_5] : memref<1x!tpu.dma_semaphore, #tpu.memory_space<semaphore_mem>> -> memref<1x!tpu.dma_semaphore, #tpu.memory_space<semaphore_mem>>
    %9 = tpu.memref_squeeze %8 : memref<1x!tpu.dma_semaphore, #tpu.memory_space<semaphore_mem>> -> memref<!tpu.dma_semaphore, #tpu.memory_space<semaphore_mem>>
    tpu.wait_dma2 semaphore(%9 : memref<!tpu.dma_semaphore, #tpu.memory_space<semaphore_mem>>) src(%6 : memref<2x256xf32, #tpu.memory_space<any>>) dst(%7 : memref<2x256xf32, #tpu.memory_space<any>>)
    return
  }
}

</mosaic_0001>

<llo_original>
// kernel: tpu_custom_call.1
$region0: #{tpu_custom_call.1}
  #allocation0 [shape = 'u32[]', space=smem, size = 0x4, offset = 0x4, fixed_abs, tag = 'smem constant byte address 0x4 - core index']
  #allocation1 [shape = 'u32[144,128]{1,0:T(1,128)}', space=vmem, size = 0x12000, scoped, tag = 'internal scratch']
  #allocation2 [shape = 's32[1]{0}', space=sflag, size = 0x4, scoped, tag = 'scratch operand']
  #allocation3 [shape = 's32[]', space=sflag, size = 0x4, offset = 0, fixed_abs, tag = 'sflag constant byte address 0x0 - dummy sync flag']
  %s0 = inlined_call_operand.hbm [shape: f32[2,4,256], index: 0, kind: input, shape index: {}]
  %s1 = inlined_call_operand.hbm [shape: f32[2,256], index: 1, kind: output, shape index: {}]
  %s2 = sld [smem:[#allocation0]]
  $region2: #{tpu_custom_call.1} parent=0
    _
  %s4 = ssub.s32 1, %s2
  %s5 = scalar_select 0, %s4, %s2
  $region1: #{tpu_custom_call.1} parent=0
    #allocation4 [shape = 'u32[6]{0}', space=smem, size = 0x18, scoped, tag = 'DMA stride descriptor']
    %s6 = scalar_lea.hbm %s0, 32
    %s8 = sshll.u32 1, 14
    %s9 = sxor.u32 4294967295, %s8
    %13 = sst [smem:[#allocation4]] 64
    %s14 = scalar_lea.smem [#allocation4], 1
    %15 = sst [smem:[%s14]] 32
    %s16 = scalar_lea.smem [#allocation4], 2
    %17 = sst [smem:[%s16]] 2
    %s18 = scalar_lea.smem [#allocation4], 3
    %19 = sst [smem:[%s18]] 128
    %s20 = scalar_lea.smem [#allocation4], 4
    %21 = sst [smem:[%s20]] 16
    %s22 = scalar_lea.smem [#allocation4], 5
    %23 = sst [smem:[%s22]] 1
    %25 = dma.general %s6, 64, %s1, [#allocation2], 131072, [#allocation4], 0, 0
    %s26 = smul.u32 2, 2
    %s27 = sshll.u32 %s26, 4
    %28 = dma.done [#allocation2], %s27
  %29 = vsyncmov [#allocation2]
  %s30 = vpop.sfrf %29
  %p31 = scmp.eq.s32.totalorder %s30, 0
  %p32 = pneg %p31
  %34 = shalt.err (%p32)

</llo_original>
